<compile_context>
chip_gen: v5e
topology: v5e:2x2
jax: 0.10.0
libtpu: 0.0.40
codegen_flags: <defaults>
</compile_context>

<pallas_src>
import functools
import math

import jax
import jax.numpy as jnp
from jax import lax
from jax.experimental import pallas as pl
from jax.experimental.pallas import tpu as pltpu


_LANE = 128
_MAX_UNROLL = 8  # fully unroll the per-block batch loop up to this many elements


def _round_up(x: int, m: int) -> int:
    return -(-x // m) * m


def _sublane(dtype) -> int:
    # second-minor padding granularity: 8 for 32-bit, 16 for 16-bit, 32 for 8-bit dtypes
    itemsize = jnp.dtype(dtype).itemsize
    return 8 * max(1, 4 // max(1, itemsize))


def _vmem_capacity_bytes() -> int:
    try:
        cap = int(getattr(pltpu.get_tpu_info(), "vmem_capacity_bytes", 0))
        if cap > 0:
            return cap
    except Exception:
        pass
    return 64 * 1024 * 1024  # most conservative (v7x per-TensorCore VMEM)


def _num_tensorcores() -> int:
    # Best-effort TensorCore count per device (v7x: 2). Falls back to 1 (v5e/v6e).
    try:
        d = jax.local_devices()[0]
        for attr in ("num_cores", "core_count"):
            v = getattr(d, attr, None)
            if isinstance(v, int) and v > 0:
                return max(1, min(int(v), 4))
    except Exception:
        pass
    return 1


# -----------------------------------------------------------------------------
# Kernel
# -----------------------------------------------------------------------------
def _cls_attention_kernel(x_ref, w_ref, o_ref, *, s_valid):
    # x_ref: (Bb, C, S_pad)  channels-major, lane-dense flattened spatial
    # w_ref: (NC, C)         1x1 conv weight (constant block index -> resident in VMEM)
    # o_ref: (Bb, NC, C)     class-attended features
    bb, _, s_pad = x_ref.shape
    w = w_ref[...]                                                    # native dtype

    def one_batch(b):
        x = x_ref[b]                                                  # (C, S_pad)

        # 1x1 conv == matmul, lane-dense over S: scores[n, s] = sum_c w[n, c] * x[c, s]
        scores = jnp.dot(w, x, preferred_element_type=jnp.float32)    # (NC, S_pad) f32

        if s_valid < s_pad:
            # Lanes [s_valid, s_pad) are wrapper-added zero padding: mask to -inf so
            # they contribute exp(-inf)=0 to the denominator and the pooling.
            lane = lax.broadcasted_iota(jnp.int32, scores.shape, 1)
            scores = jnp.where(lane < s_valid, scores, -jnp.inf)

        # Softmax over the spatial (lane) axis in f32; normalization deferred.
        m = jnp.max(scores, axis=-1, keepdims=True)                   # (NC, 1)
        e = jnp.exp(scores - m)                                       # (NC, S_pad)
        denom = jnp.sum(e, axis=-1, keepdims=True)                    # (NC, 1)

        # Unnormalized pooling: cls_u[n, c] = sum_s e[n, s] * x[c, s].
        # A.B^T contraction over the shared last axis (same pattern as flash-attn q.k^T),
        # keeps the big (C, S) tile un-transposed on the MXU path.
        cls_u = lax.dot_general(
            e.astype(x.dtype), x,
            dimension_numbers=(((1,), (1,)), ((), ())),
            preferred_element_type=jnp.float32)                       # (NC, C)

        # Exact reciprocal: denom is only (NC, 1), and the __main__ test uses 1e-4 tol.
        cls = cls_u * pl.reciprocal(denom, approx=False)
        o_ref[b] = cls.astype(o_ref.dtype)

    if bb <= _MAX_UNROLL:
        # Static unroll: gives the scheduler visibility to overlap MXU/EUP/vld
        # across batch elements within one grid step.
        for b in range(bb):
            one_batch(b)
    else:
        @pl.loop(0, bb)
        def _(b):
            one_batch(b)


# -----------------------------------------------------------------------------
# Block sizing / VMEM budgeting (padding- and core-count-aware)
# -----------------------------------------------------------------------------
def _pick_block_batch(B, C, S_pad, dtype):
    itemsize = jnp.dtype(dtype).itemsize
    c_pad = _round_up(C, _sublane(dtype))
    per_elem = c_pad * S_pad * itemsize            # true padded VMEM footprint per batch elem

    vmem_cap = _vmem_capacity_bytes()
    # ~1/6 of VMEM per in-flight input buffer (double-buffered => ~1/3), within 8..16 MiB.
    target = min(16 * 1024 * 1024, max(8 * 1024 * 1024, vmem_cap // 6))
    target = min(target, vmem_cap // 6)

    bb = max(1, min(B, target // per_elem))

    # Keep >= 2 grid steps per TensorCore (pipelining; megacore sharding on v7x)
    # whenever the batch is large enough to allow it.
    min_steps = 2 * _num_tensorcores()
    if B >= min_steps:
        bb = min(bb, B // min_steps)
    bb = max(1, bb)
    while B % bb != 0:                              # exact grid, no remainder handling
        bb -= 1
    return bb


def _vmem_limit_bytes(bb, C, S_pad, NC, dtype):
    item = jnp.dtype(dtype).itemsize
    sub = _sublane(dtype)
    c_sub = _round_up(C, sub)
    c_lane = _round_up(C, _LANE)
    nc_sub = _round_up(NC, sub)
    nc_f32 = _round_up(NC, 8)

    in_block = bb * c_sub * S_pad * item
    w_block = nc_sub * c_lane * item
    out_block = bb * nc_sub * c_lane * item
    live = min(bb, _MAX_UNROLL)
    interm = live * 4 * nc_f32 * (2 * S_pad + 2 * c_lane)   # f32 scores/e + matmul accumulators

    needed = 2 * (in_block + w_block + out_block) + interm + (8 << 20)  # + Mosaic scratch margin
    cap = (_vmem_capacity_bytes() * 9) // 10
    return int(max(min(needed, cap), 32 << 20))


# -----------------------------------------------------------------------------
# Wrapper
# -----------------------------------------------------------------------------
def cls_attention(feats_nchw, conv_weight, *, block_batch=None, interpret=False):
    """feats_nchw: (B, C, H, W); conv_weight: (NC, C, 1, 1). Returns (B, NC, C)."""
    B, C, H, W = feats_nchw.shape
    NC = conv_weight.shape[0]
    S = H * W
    S_pad = _round_up(S, _LANE)

    # Free reshape of NCHW — no HBM transpose of the feature tensor.
    x = feats_nchw.reshape(B, C, S)
    if S_pad != S:
        # Pad spatial to a lane multiple so every physical lane is well-defined;
        # the kernel masks lanes >= S to -inf. Zero extra cost when S % 128 == 0.
        x = jnp.pad(x, ((0, 0), (0, 0), (0, S_pad - S)))
    w = conv_weight.reshape(NC, C)

    bb = block_batch if block_batch is not None else _pick_block_batch(B, C, S_pad, x.dtype)
    assert B % bb == 0, "block_batch must divide the batch size"
    grid_b = B // bb
    vmem_limit = _vmem_limit_bytes(bb, C, S_pad, NC, x.dtype)

    kernel = functools.partial(_cls_attention_kernel, s_valid=S)

    return pl.pallas_call(
        kernel,
        out_shape=jax.ShapeDtypeStruct((B, NC, C), feats_nchw.dtype),
        grid_spec=pltpu.PrefetchScalarGridSpec(
            num_scalar_prefetch=0,
            grid=(grid_b,),
            in_specs=[
                pl.BlockSpec((bb, C, S_pad), lambda i: (i, 0, 0)),
                pl.BlockSpec((NC, C), lambda i: (0, 0)),
            ],
            out_specs=pl.BlockSpec((bb, NC, C), lambda i: (i, 0, 0)),
        ),
        compiler_params=pltpu.CompilerParams(
            dimension_semantics=("parallel",),
            vmem_limit_bytes=vmem_limit),
        interpret=interpret,
    )(x, w)


def cls_attention_ref(feats_nchw, conv_weight):
    """Pure-JAX (f32) reference mirroring the PyTorch forward."""
    B, C, H, W = feats_nchw.shape
    NC = conv_weight.shape[0]
    f = feats_nchw.astype(jnp.float32)
    w = conv_weight.reshape(NC, C).astype(jnp.float32)
    att = jnp.einsum('nc,bchw->bnhw', w, f).reshape(B, NC, H * W)
    att = jax.nn.softmax(att, axis=2)
    feats_t = f.reshape(B, C, H * W).transpose(0, 2, 1)
    return jnp.einsum('bns,bsc->bnc', att, feats_t)


if __name__ == "__main__":
    key = jax.random.PRNGKey(0)

    def run_case(B, C, H, W, NC, dtype, atol, rtol, k):
        k_x, k_w = jax.random.split(k)
        feats = jax.random.normal(k_x, (B, C, H, W), dtype=jnp.float32).astype(dtype)
        conv_w = (jax.random.normal(k_w, (NC, C, 1, 1), dtype=jnp.float32)
                  * (1.0 / math.sqrt(C))).astype(dtype)
        out = jax.block_until_ready(cls_attention(feats, conv_w))
        ref = cls_attention_ref(feats, conv_w)
        assert out.shape == (B, NC, C)
        assert jnp.allclose(out.astype(jnp.float32), ref, atol=atol, rtol=rtol), \
            f"mismatch vs reference (dtype={dtype}, S={H * W})"

    keys = jax.random.split(key, 3)
    # 1) lane-aligned spatial (16*16 = 256), f32
    run_case(2, 32, 16, 16, 8, jnp.float32, 1e-4, 1e-4, keys[0])
    # 2) spatial NOT a multiple of 128 (14*14 = 196): exercises wrapper pad + in-kernel mask
    run_case(2, 32, 14, 14, 8, jnp.float32, 1e-4, 1e-4, keys[1])
    # 3) bf16 inputs (softmax weights quantized to bf16 before pooling) -> looser tolerance
    run_case(2, 32, 16, 16, 8, jnp.bfloat16, 5e-2, 5e-2, keys[2])

    print("KERNEL_OK")
</pallas_src>

<mosaic_0001>
module attributes {stable_mosaic.version = 11 : i64} {
  func.func @_cls_attention_kernel(%arg0: i32, %arg1: memref<1x32x256xf32, #tpu.memory_space<vmem>>, %arg2: memref<8x32xf32, #tpu.memory_space<vmem>>, %arg3: memref<1x8x32xf32, #tpu.memory_space<vmem>>) attributes {dimension_semantics = [#tpu.dimension_semantics<parallel>], iteration_bounds = array<i64: 2>, scalar_prefetch = 0 : i64, scratch_operands = 0 : i64, tpu.core_type = #tpu.core_type<tc>, window_params = [{transform_indices = @transform_0, window_bounds = array<i64: 1, 32, 256>}, {pipeline_mode = #tpu.pipeline_mode<synchronous>, transform_indices = @transform_1, window_bounds = array<i64: 8, 32>}, {transform_indices = @transform_2, window_bounds = array<i64: 1, 8, 32>}]} {
    %c0 = arith.constant 0 : index
    %c0_0 = arith.constant 0 : index
    %0 = vector.load %arg2[%c0, %c0_0] : memref<8x32xf32, #tpu.memory_space<vmem>>, vector<8x32xf32>
    %c0_1 = arith.constant 0 : index
    %c0_2 = arith.constant 0 : index
    %c0_3 = arith.constant 0 : index
    %1 = vector.load %arg1[%c0_1, %c0_2, %c0_3] : memref<1x32x256xf32, #tpu.memory_space<vmem>>, vector<1x32x256xf32>
    %2 = vector.shape_cast %1 : vector<1x32x256xf32> to vector<32x256xf32>
    %cst = arith.constant dense<0.000000e+00> : vector<8x256xf32>
    %3 = tpu.matmul %0, %2, %cst {dimension_numbers = #tpu.dot_dimension_numbers<[1], [0], [0], [1], [0, 0, 1, 1], [], []>} : vector<8x32xf32>, vector<32x256xf32>, vector<8x256xf32> -> vector<8x256xf32>
    %cst_4 = arith.constant dense<0xFF800000> : vector<8xf32>
    %4 = vector.multi_reduction <maximumf>, %3, %cst_4 [1] : vector<8x256xf32> to vector<8xf32>
    %5 = vector.shape_cast %4 : vector<8xf32> to vector<8x1xf32>
    %6 = vector.broadcast %5 : vector<8x1xf32> to vector<8x256xf32>
    %7 = arith.subf %3, %6 : vector<8x256xf32>
    %8 = math.exp %7 : vector<8x256xf32>
    %cst_5 = arith.constant dense<0.000000e+00> : vector<8xf32>
    %9 = vector.multi_reduction <add>, %8, %cst_5 [1] : vector<8x256xf32> to vector<8xf32>
    %10 = vector.shape_cast %9 : vector<8xf32> to vector<8x1xf32>
    %cst_6 = arith.constant dense<0.000000e+00> : vector<8x32xf32>
    %11 = tpu.matmul %8, %2, %cst_6 {dimension_numbers = #tpu.dot_dimension_numbers<[1], [1], [0], [0], [0, 0, 1, 0], [], []>} : vector<8x256xf32>, vector<32x256xf32>, vector<8x32xf32> -> vector<8x32xf32>
    %12 = tpu.reciprocal %10 : vector<8x1xf32> -> vector<8x1xf32>
    %13 = vector.broadcast %12 : vector<8x1xf32> to vector<8x32xf32>
    %14 = arith.mulf %11, %13 : vector<8x32xf32>
    %c0_7 = arith.constant 0 : index
    %c0_8 = arith.constant 0 : index
    %c0_9 = arith.constant 0 : index
    %15 = vector.load %arg3[%c0_7, %c0_8, %c0_9] : memref<1x8x32xf32, #tpu.memory_space<vmem>>, vector<1x8x32xf32>
    %16 = vector.shape_cast %15 : vector<1x8x32xf32> to vector<8x32xf32>
    %17 = vector.shape_cast %14 : vector<8x32xf32> to vector<1x8x32xf32>
    tpu.vector_store %arg3[%c0_7, %c0_8, %c0_9], %17 {strides = array<i32>} : memref<1x8x32xf32, #tpu.memory_space<vmem>>, vector<1x8x32xf32>,
    return
  }
  func.func @transform_0(%arg0: i32) -> (i32, i32, i32) {
    %c0_i32 = arith.constant 0 : i32
    %c0_i32_0 = arith.constant 0 : i32
    %c0_i32_1 = arith.constant 0 : i32
    return %arg0, %c0_i32, %c0_i32_0 : i32, i32, i32
  }
  func.func @transform_1(%arg0: i32) -> (i32, i32) {
    %c0_i32 = arith.constant 0 : i32
    %c0_i32_0 = arith.constant 0 : i32
    %c0_i32_1 = arith.constant 0 : i32
    return %c0_i32, %c0_i32_0 : i32, i32
  }
  func.func @transform_2(%arg0: i32) -> (i32, i32, i32) {
    %c0_i32 = arith.constant 0 : i32
    %c0_i32_0 = arith.constant 0 : i32
    %c0_i32_1 = arith.constant 0 : i32
    return %arg0, %c0_i32, %c0_i32_0 : i32, i32, i32
  }
}

</mosaic_0001>

<llo_original>
// kernel: tpu_custom_call.1
$region0: #{tpu_custom_call.1}
  #allocation0 [shape = 'u32[]', space=smem, size = 0x4, offset = 0x4, fixed_abs, tag = 'smem constant byte address 0x4 - core index']
  #allocation1 [shape = 'u32[72,128]{1,0:T(1,128)}', space=vmem, size = 0x9000, scoped, tag = 'internal scratch']
  %s0 = inlined_call_operand.hbm [shape: f32[2,32,256], index: 0, kind: input, shape index: {}]
  %s1 = inlined_call_operand.hbm [shape: f32[8,32], index: 1, kind: input, shape index: {}]
  %s2 = inlined_call_operand.hbm [shape: f32[2,8,32], index: 2, kind: output, shape index: {}]
  %s3 = sld [smem:[#allocation0]]
  $region49: #{tpu_custom_call.1} parent=0
    _
  %s5 = ssub.s32 1, %s3
  %s6 = scalar_select 0, %s5, %s3
  $region1: #{tpu_custom_call.1} parent=0
    #allocation2 [shape = 'u8[65536]{0}', space=vmem, size = 0x10000, scoped, tag = 'input window, operand 0']
    #allocation3 [shape = 's32[2]{0}', space=sflag, size = 0x8, scoped, tag = 'scoped memory for tpu_custom_call.1']
    #allocation4 [shape = 's32[2]{0}', space=sflag, size = 0x8, scoped, tag = 'scoped memory for tpu_custom_call.1']
    #allocation5 [shape = 'u8[4096]{0}', space=vmem, size = 0x1000, scoped, tag = 'input window, operand 1, single buffered']
    #allocation6 [shape = 's32[1]{0}', space=sflag, size = 0x4, scoped, tag = 'scoped memory for tpu_custom_call.1']
    #allocation7 [shape = 'u8[8192]{0}', space=vmem, size = 0x2000, scoped, tag = 'output window, operand 0']
    %7 = vsyncpa [#allocation3], 0
    %s8 = scalar_lea.sflag [#allocation3], 1
    %9 = vsyncpa %s8, 0
    %10 = vsyncpa [#allocation6], 0
    %11 = vsyncpa [#allocation4], 0
    %s12 = scalar_lea.sflag [#allocation4], 1
    %13 = vsyncpa %s12, 0
    loop: start=0, step=1, limit=4
    $region2: #{tpu_custom_call.1} parent=1 // loop_pre_header
      _
    $region3: #{tpu_custom_call.1} parent=1 // loop_header
      %s15 = sphi 0, %s19
      %p16 = scmp.ge.s32.totalorder %s15, 4
      %s25 = sphi 0, %s27
      %s28 = sphi 0, %s25
      %s29 = sphi 0, %s28
      %s45 = sphi 0, %s29
      %s49 = sphi 0, %s49
      %s51 = sphi 0, %s49
      %s52 = sphi 0, %s51
      %s66 = sphi 0, %s52
      %s72 = sphi 0, %s74
      %s75 = sphi 0, %s72
      %s76 = sphi 0, %s75
      %s92 = sphi 0, %s76
    $region4: #{tpu_custom_call.1} parent=1 // loop_header_branch
      %18 = sbr.rel (%p16) target = $region8
    $region5: #{tpu_custom_call.1} parent=1 // loop_body
      %s20 = ssub.s32 %s15, 1
      %s21 = ssub.s32 %s15, 2
      %s22 = sadd.s32 %s15, 1
      %s23 = ssub.s32 %s15, %s22
      %p24 = scmp.eq.s32.totalorder %s23, 0
      %s26 = sadd.s32 %s25, 1
      %s27 = scalar_select %p24, %s25, %s26
      %p30 = pneg %p24
      %p31 = scmp.eq.s32.totalorder %s15, 1
      %p32 = por %p30, %p31
      %p33 = scmp.ne.s32.totalorder %s25, %s28
      %p34 = scmp.eq.s32.totalorder %s15, 0
      %p35 = por %p33, %p34
      %p36 = scmp.ne.s32.totalorder %s25, %s28
      %p37 = scmp.eq.s32.totalorder %s20, 1
      %p38 = por %p36, %p37
      %p39 = scmp.ne.s32.totalorder %s28, %s29
      %p40 = scmp.eq.s32.totalorder %s20, 0
      %p41 = por %p39, %p40
      %p42 = scmp.ne.s32.totalorder %s28, %s29
      %p43 = scmp.eq.s32.totalorder %s21, 1
      %p44 = por %p42, %p43
      %p46 = scmp.ne.s32.totalorder %s29, %s45
      %p47 = scmp.eq.s32.totalorder %s21, 0
      %p48 = por %p46, %p47
      %s50 = sadd.s32 %s49, 1
      %p53 = scmp.eq.s32.totalorder %s15, 1
      %p54 = scmp.ne.s32.totalorder %s49, %s51
      %p55 = scmp.eq.s32.totalorder %s15, 0
      %p56 = por %p54, %p55
      %p57 = scmp.ne.s32.totalorder %s49, %s51
      %p58 = scmp.eq.s32.totalorder %s20, 1
      %p59 = por %p57, %p58
      %p60 = scmp.ne.s32.totalorder %s51, %s52
      %p61 = scmp.eq.s32.totalorder %s20, 0
      %p62 = por %p60, %p61
      %p63 = scmp.ne.s32.totalorder %s51, %s52
      %p64 = scmp.eq.s32.totalorder %s21, 1
      %p65 = por %p63, %p64
      %p67 = scmp.ne.s32.totalorder %s52, %s66
      %p68 = scmp.eq.s32.totalorder %s21, 0
      %p69 = por %p67, %p68
      %s70 = ssub.s32 %s15, %s22
      %p71 = scmp.eq.s32.totalorder %s70, 0
      %s73 = sadd.s32 %s72, 1
      %s74 = scalar_select %p71, %s72, %s73
      %p77 = pneg %p71
      %p78 = scmp.eq.s32.totalorder %s15, 1
      %p79 = por %p77, %p78
      %p80 = scmp.ne.s32.totalorder %s72, %s75
      %p81 = scmp.eq.s32.totalorder %s15, 0
      %p82 = por %p80, %p81
      %p83 = scmp.ne.s32.totalorder %s72, %s75
      %p84 = scmp.eq.s32.totalorder %s20, 1
      %p85 = por %p83, %p84
      %p86 = scmp.ne.s32.totalorder %s75, %s76
      %p87 = scmp.eq.s32.totalorder %s20, 0
      %p88 = por %p86, %p87
      %p89 = scmp.ne.s32.totalorder %s75, %s76
      %p90 = scmp.eq.s32.totalorder %s21, 1
      %p91 = por %p89, %p90
      %p93 = scmp.ne.s32.totalorder %s76, %s92
      %p94 = scmp.eq.s32.totalorder %s21, 0
      %p95 = por %p93, %p94
      %p96 = scmp.le.s32.totalorder 1, %s15
      %p97 = scmp.lt.s32.totalorder %s15, 3
      %p98 = pnand %p96, %p97
      %p99 = pneg %p98
      // Predicated region
      $region9: #{tpu_custom_call.1} parent=5 // pred_check
        _
      $region10: #{tpu_custom_call.1} parent=5 // pred_check_branch
        %101 = sbr.rel (%p98) target = $region12
      $region11: #{tpu_custom_call.1} parent=5 // pred_region
        %s102 = ssub.s32 %s15, 1
        // Predicated region
        $region13: #{tpu_custom_call.1} parent=11 // pred_check
          %p103 = pneg %p62
        $region14: #{tpu_custom_call.1} parent=11 // pred_check_branch
          %105 = sbr.rel (%p103) target = $region16
        $region15: #{tpu_custom_call.1} parent=11 // pred_region
          %107 = vsyncadd [#allocation6], 0
          %s109 = sshll.u32 %s1, 4
          %s110 = int_to_ptr.hbm [resolvable:$true] %s109
          %s111 = sshll.u32 [#allocation5], 4
          %s112 = int_to_ptr.vmem [resolvable:$true] %s111
          %114 = dma.hbm_to_vmem [thread:$0]  %s110, 128, %s112, [#allocation6]
        $region16: #{tpu_custom_call.1} parent=11 // pred_fallthru
          _
      $region12: #{tpu_custom_call.1} parent=5 // pred_fallthru
        _
      %p115 = scmp.lt.s32.totalorder %s15, 2
      // Predicated region
      $region17: #{tpu_custom_call.1} parent=5 // pred_check
        %p116 = pneg %p115
      $region18: #{tpu_custom_call.1} parent=5 // pred_check_branch
        %118 = sbr.rel (%p116) target = $region20
      $region19: #{tpu_custom_call.1} parent=5 // pred_region
        // Predicated region
        $region21: #{tpu_custom_call.1} parent=19 // pred_check
          %p119 = pneg %p35
        $region22: #{tpu_custom_call.1} parent=19 // pred_check_branch
          %121 = sbr.rel (%p119) target = $region24
        $region23: #{tpu_custom_call.1} parent=19 // pred_region
          %s122 = sand.u32 %s25, 1
          %s123 = scalar_lea.sflag [#allocation3], %s122
          %s124 = sand.u32 %s25, 1
          %s125 = smul.addr %s124, 64
          %s126 = scalar_lea.vmem [#allocation2], %s125
          %128 = vsyncadd %s123, 0
          %s129 = smul.addr %s15, 8
          %s130 = smul.addr %s129, 8
          %s131 = scalar_lea.hbm %s0, %s130
          %s132 = sshll.u32 %s131, 4
          %s133 = int_to_ptr.hbm [resolvable:$true] %s132
          %s134 = sshll.u32 %s126, 4
          %s135 = int_to_ptr.vmem [resolvable:$true] %s134
          %140 = dma.hbm_to_vmem [thread:$0]  %s133, 1024, %s135, %s123, 256, 256, 16
        $region24: #{tpu_custom_call.1} parent=19 // pred_fallthru
          _
      $region20: #{tpu_custom_call.1} parent=5 // pred_fallthru
        _
      %p141 = scmp.le.s32.totalorder 1, %s15
      %p142 = scmp.lt.s32.totalorder %s15, 3
      %p143 = pnand %p141, %p142
      %p144 = pneg %p143
      // Predicated region
      $region25: #{tpu_custom_call.1} parent=5 // pred_check
        _
      $region26: #{tpu_custom_call.1} parent=5 // pred_check_branch
        %146 = sbr.rel (%p143) target = $region28
      $region27: #{tpu_custom_call.1} parent=5 // pred_region
        %s147 = ssub.s32 %s15, 1
        %s148 = sand.u32 %s28, 1
        %s149 = scalar_lea.sflag [#allocation3], %s148
        %s150 = sand.u32 %s28, 1
        %s151 = smul.addr %s150, 64
        %s152 = scalar_lea.vmem [#allocation2], %s151
        // Predicated region
        $region29: #{tpu_custom_call.1} parent=27 // pred_check
          %p153 = pneg %p41
        $region30: #{tpu_custom_call.1} parent=27 // pred_check_branch
          %155 = sbr.rel (%p153) target = $region32
        $region31: #{tpu_custom_call.1} parent=27 // pred_region
          %157 = dma.done %s149, 1024
        $region32: #{tpu_custom_call.1} parent=27 // pred_fallthru
          _
        // Predicated region
        $region33: #{tpu_custom_call.1} parent=27 // pred_check
          %p158 = pneg %p62
        $region34: #{tpu_custom_call.1} parent=27 // pred_check_branch
          %160 = sbr.rel (%p158) target = $region36
        $region35: #{tpu_custom_call.1} parent=27 // pred_region
          %162 = dma.done [#allocation6], 128
        $region36: #{tpu_custom_call.1} parent=27 // pred_fallthru
          _
        %s163 = sand.u32 %s28, 1
        %s164 = scalar_lea.sflag [#allocation3], %s163
        %s165 = sand.u32 %s28, 1
        %s166 = smul.addr %s165, 64
        %s167 = scalar_lea.vmem [#allocation2], %s166
        %p168 = pneg %p41
        %p169 = pneg %p38
        %p170 = pneg %p62
        %p171 = pneg %p59
        %p172 = pneg %p88
        %p173 = pneg %p85
        %s174 = sand.u32 %s75, 1
        %s175 = scalar_lea.sflag [#allocation4], %s174
        %s176 = sand.u32 %s75, 1
        %s177 = smul.addr %s176, 8
        %s178 = scalar_lea.vmem [#allocation7], %s177
        %v179 = vld [vmem:[#allocation5] sm:$0xff]
        %v180 = vld [vmem:[%s152] sm:$0xff]
        %v181 = vld [vmem:[%s152 + $0x8] sm:$0xff]
        %v182 = vld [vmem:[%s152 + $0x10] sm:$0xff]
        %v183 = vld [vmem:[%s152 + $0x18] sm:$0xff]
        %v184 = vld [vmem:[%s152 + $0x20] sm:$0xff]
        %v185 = vld [vmem:[%s152 + $0x28] sm:$0xff]
        %v186 = vld [vmem:[%s152 + $0x30] sm:$0xff]
        %v187 = vld [vmem:[%s152 + $0x38] sm:$0xff]
        %vm188 = vcmask 261120
        %v190 = vsel %vm188, %v179, 0
        %192 = vmatpush.msra.mxu0 0.0
        %193 = vmatpush.msra.mxu0 0.0
        %194 = vmatpush.msra.mxu0 0.0
        %195 = vmatpush.msra.mxu0 0.0
        %196 = vmatpush.msra.mxu0 0.0
        %197 = vmatpush.msra.mxu0 0.0
        %198 = vmatpush.msra.mxu0 0.0
        %199 = vmatpush.msra.mxu0 0.0
        %200 = vmatpush.msra.mxu0 0.0
        %201 = vmatpush.msra.mxu0 0.0
        %202 = vmatpush.msra.mxu0 0.0
        %203 = vmatpush.msra.mxu0 0.0
        %204 = vmatpush.msra.mxu0 %v186
        %205 = vmatpush.msra.mxu0 %v184
        %206 = vmatpush.msra.mxu0 %v182
        %207 = vmatpush.msra.mxu0 %v180
        %208 = vmatmul.f32.gmra.mxu0 %v190
        %v209 = vpop.f32.mrf.mxu0
        %v210 = vadd.f32 0.0, %v209
        %211 = vdwg.mxu0
        %212 = vmatpush.msra.mxu0 0.0
        %213 = vmatpush.msra.mxu0 0.0
        %214 = vmatpush.msra.mxu0 0.0
        %215 = vmatpush.msra.mxu0 0.0
        %216 = vmatpush.msra.mxu0 0.0
        %217 = vmatpush.msra.mxu0 0.0
        %218 = vmatpush.msra.mxu0 0.0
        %219 = vmatpush.msra.mxu0 0.0
        %220 = vmatpush.msra.mxu0 0.0
        %221 = vmatpush.msra.mxu0 0.0
        %222 = vmatpush.msra.mxu0 0.0
        %223 = vmatpush.msra.mxu0 0.0
        %224 = vmatpush.msra.mxu0 %v187
        %225 = vmatpush.msra.mxu0 %v185
        %226 = vmatpush.msra.mxu0 %v183
        %227 = vmatpush.msra.mxu0 %v181
        %228 = vmatmul.f32.gmra.mxu0 %v190
        %v229 = vpop.f32.mrf.mxu0
        %v230 = vadd.f32 0.0, %v229
        %231 = vdwg.mxu0
        %v232 = vmax.f32 %v210, %v230
        %233 = vmax.xlane.f32.xlu0 %v232
        %v234 = vpop.xlane.xlu0 %233
        %v235 = vsub.f32 %v210, %v234
        %v236 = vsub.f32 %v230, %v234
        %v237 = vmul.f32 %v235, 1.442695
        %v238 = vpow.pop %v237
        %v239 = vmul.f32 %v236, 1.442695
        %v240 = vpow.pop %v239
        %v241 = vadd.f32 %v238, %v240
        %242 = vadd.xlane.f32.xlu0 %v241
        %v243 = vpop.xlane.xlu0 %242
        %244 = vmatpush.xpose.msra.mxu0 0.0
        %245 = vmatpush.xpose.msra.mxu0 0.0
        %246 = vmatpush.xpose.msra.mxu0 0.0
        %247 = vmatpush.xpose.msra.mxu0 0.0
        %248 = vmatpush.xpose.msra.mxu0 0.0
        %249 = vmatpush.xpose.msra.mxu0 0.0
        %250 = vmatpush.xpose.msra.mxu0 0.0
        %251 = vmatpush.xpose.msra.mxu0 0.0
        %252 = vmatpush.xpose.msra.mxu0 0.0
        %253 = vmatpush.xpose.msra.mxu0 0.0
        %254 = vmatpush.xpose.msra.mxu0 0.0
        %255 = vmatpush.xpose.msra.mxu0 0.0
        %256 = vmatpush.xpose.msra.mxu0 %v186
        %257 = vmatpush.xpose.msra.mxu0 %v184
        %258 = vmatpush.xpose.msra.mxu0 %v182
        %259 = vmatpush.xpose.msra.mxu0 %v180
        %260 = vmatmul.f32.gmra.mxu0 %v238
        %v261 = vpop.f32.mrf.mxu0
        %v262 = vadd.f32 0.0, %v261
        %263 = vdwg.mxu0
        %264 = vmatpush.xpose.msra.mxu0 0.0
        %265 = vmatpush.xpose.msra.mxu0 0.0
        %266 = vmatpush.xpose.msra.mxu0 0.0
        %267 = vmatpush.xpose.msra.mxu0 0.0
        %268 = vmatpush.xpose.msra.mxu0 0.0
        %269 = vmatpush.xpose.msra.mxu0 0.0
        %270 = vmatpush.xpose.msra.mxu0 0.0
        %271 = vmatpush.xpose.msra.mxu0 0.0
        %272 = vmatpush.xpose.msra.mxu0 0.0
        %273 = vmatpush.xpose.msra.mxu0 0.0
        %274 = vmatpush.xpose.msra.mxu0 0.0
        %275 = vmatpush.xpose.msra.mxu0 0.0
        %276 = vmatpush.xpose.msra.mxu0 %v187
        %277 = vmatpush.xpose.msra.mxu0 %v185
        %278 = vmatpush.xpose.msra.mxu0 %v183
        %279 = vmatpush.xpose.msra.mxu0 %v181
        %280 = vmatmul.f32.gmra.mxu0 %v240
        %v281 = vpop.f32.mrf.mxu0
        %v282 = vadd.f32 %v262, %v281
        %283 = vdwg.mxu0
        %v284 = vrcp.pop %v243
        %v285 = vmul.f32 %v243, %v284
        %v286 = vsub.f32 1.0, %v285
        %v287 = vmul.f32 %v284, %v286
        %v288 = vadd.f32 %v284, %v287
        %vm289 = vweird.f32 %v243
        %vm290 = vweird.f32 %v284
        %vm291 = vmor %vm289, %vm290
        %v292 = vsel %vm291, %v284, %v288
        %v293 = vand.u32 2147483647, %v243
        %vm294 = vcmp.eq.f32.partialorder %v293, 8.507059e+37
        %v295 = vand.u32 %v243, 2147483648
        %v296 = vor.u32 1.1754944e-38, %v295
        %v297 = vsel %vm294, %v296, %v292
        %v298 = vmul.f32 %v282, %v297
        %299 = vst.msk [vmem:[%s178] sm:$0xff] %vm188, %v298
        %s300 = sand.u32 %s75, 1
        %s301 = scalar_lea.sflag [#allocation4], %s300
        %s302 = sand.u32 %s75, 1
        %s303 = smul.addr %s302, 8
        %s304 = scalar_lea.vmem [#allocation7], %s303
        // Predicated region
        $region37: #{tpu_custom_call.1} parent=27 // pred_check
          %p305 = pneg %p85
        $region38: #{tpu_custom_call.1} parent=27 // pred_check_branch
          %307 = sbr.rel (%p305) target = $region40
        $region39: #{tpu_custom_call.1} parent=27 // pred_region
          %309 = vsyncadd %s301, 0
          %s310 = smul.addr %s20, 8
          %s311 = scalar_lea.hbm %s2, %s310
          %s313 = sshll.u32 %s304, 4
          %s314 = int_to_ptr.vmem [resolvable:$true] %s313
          %s315 = sshll.u32 %s311, 4
          %s316 = int_to_ptr.hbm [resolvable:$true] %s315
          %318 = dma.vmem_to_hbm [thread:$0]  %s314, 128, %s316, %s301
        $region40: #{tpu_custom_call.1} parent=27 // pred_fallthru
          _
      $region28: #{tpu_custom_call.1} parent=5 // pred_fallthru
        _
      %p319 = scmp.le.s32.totalorder 2, %s15
      // Predicated region
      $region41: #{tpu_custom_call.1} parent=5 // pred_check
        %p320 = pneg %p319
      $region42: #{tpu_custom_call.1} parent=5 // pred_check_branch
        %322 = sbr.rel (%p320) target = $region44
      $region43: #{tpu_custom_call.1} parent=5 // pred_region
        %s323 = ssub.s32 %s15, 2
        // Predicated region
        $region45: #{tpu_custom_call.1} parent=43 // pred_check
          %p324 = pneg %p91
        $region46: #{tpu_custom_call.1} parent=43 // pred_check_branch
          %326 = sbr.rel (%p324) target = $region48
        $region47: #{tpu_custom_call.1} parent=43 // pred_region
          %s327 = sand.u32 %s76, 1
          %s328 = scalar_lea.sflag [#allocation4], %s327
          %s329 = sand.u32 %s76, 1
          %s330 = smul.addr %s329, 8
          %s331 = scalar_lea.vmem [#allocation7], %s330
          %333 = dma.done %s328, 128
        $region48: #{tpu_custom_call.1} parent=43 // pred_fallthru
          _
      $region44: #{tpu_custom_call.1} parent=5 // pred_fallthru
        _
    $region6: #{tpu_custom_call.1} parent=1 // loop_footer
      %s19 = sadd.s32 1, %s15
    $region7: #{tpu_custom_call.1} parent=1 // loop_footer_branch
      %14 = sbr.rel target = $region3
    $region8: #{tpu_custom_call.1} parent=1 // loop_exit
      _
    %334 = vsyncpa [#allocation3], 1
    %s335 = scalar_lea.sflag [#allocation3], 1
    %336 = vsyncpa %s335, 1
    %337 = vsyncpa [#allocation6], 1
    %338 = vsyncpa [#allocation4], 1
    %s339 = scalar_lea.sflag [#allocation4], 1
    %340 = vsyncpa %s339, 1

</llo_original>
